<compile_context>
chip_gen: v7x
topology: tpu7x:2x2x1
jax: 0.10.0
libtpu: 0.0.40
codegen_flags: <defaults>
</compile_context>

<pallas_src>
import functools

import jax
import jax.numpy as jnp
from jax import lax
from jax.experimental import pallas as pl
from jax.experimental.pallas import tpu as pltpu

_MIB = 1024 * 1024


def _ceil_to(x, m):
    return ((x + m - 1) // m) * m


def _vmem_capacity_bytes(default=128 * _MIB):
    try:
        return int(pltpu.get_tpu_info().vmem_capacity_bytes)
    except Exception:  # pragma: no cover - conservative fallback
        return default


# ----------------------------------------------------------------------------
# Streaming path: grid = (M tiles, pf tiles); f32 accumulator resident over pf.
# ----------------------------------------------------------------------------
def ffn_stream_kernel(x_ref, w1_ref, b1_ref, w2_ref, b2_ref, o_ref, acc_ref):
    # x_ref : (tm, hid)   w1_ref: (hid, tk)   b1_ref: (1, tk)   [f32]
    # w2_ref: (tk, hid)   b2_ref: (1, hid)    [f32]
    # o_ref : (tm, hid)   acc_ref: (tm, hid) f32 scratch, resident over k.
    k = pl.program_id(1)

    @pl.when(k == 0)
    def _init():
        acc_ref[...] = jnp.zeros_like(acc_ref)

    h = jnp.dot(x_ref[...], w1_ref[...], preferred_element_type=jnp.float32)
    h = jnp.maximum(h + b1_ref[...], 0.0)
    # dropout (eval mode) == identity
    acc_ref[...] += jnp.dot(h.astype(w2_ref.dtype), w2_ref[...],
                            preferred_element_type=jnp.float32)

    @pl.when(k == pl.num_programs(1) - 1)
    def _finalize():
        o_ref[...] = (acc_ref[...] + b2_ref[...]).astype(o_ref.dtype)


# ----------------------------------------------------------------------------
# Weight-resident path: grid = (M tiles,); W1/W2 stay in VMEM across all tiles,
# pf reduction is an in-kernel loop over 128-aligned slices.
# ----------------------------------------------------------------------------
def ffn_resident_kernel(x_ref, w1_ref, b1_ref, w2_ref, b2_ref, o_ref, acc_ref,
                        *, tk, n_k):
    acc_ref[...] = jnp.zeros_like(acc_ref)
    x = x_ref[...]

    def step(w1s, b1s, w2s):
        h = jnp.dot(x, w1s, preferred_element_type=jnp.float32)
        h = jnp.maximum(h + b1s, 0.0)
        # dropout (eval mode) == identity
        acc_ref[...] += jnp.dot(h.astype(w2s.dtype), w2s,
                                preferred_element_type=jnp.float32)

    if n_k == 1:
        step(w1_ref[...], b1_ref[...], w2_ref[...])
    else:
        # tk is guaranteed a multiple of 128 whenever n_k > 1.
        def body(k, carry):
            off = pl.multiple_of(k * tk, tk)
            step(w1_ref[:, pl.ds(off, tk)],
                 b1_ref[:, pl.ds(off, tk)],
                 w2_ref[pl.ds(off, tk), :])
            return carry

        lax.fori_loop(0, n_k, body, 0, unroll=(n_k <= 8))

    o_ref[...] = (acc_ref[...] + b2_ref[...]).astype(o_ref.dtype)


# ----------------------------------------------------------------------------
# Wrapper
# ----------------------------------------------------------------------------
def positionwise_ffn(x, w1, b1, w2, b2, *, tm=None, tk=None,
                     compute_dtype=jnp.bfloat16, weight_resident=None):
    """x: [batch, seq, hid]; w1: [hid, pf]; b1: [pf]; w2: [pf, hid]; b2: [hid].

    compute_dtype: MXU dtype for x / W1 / W2 (accumulation is always f32).
    weight_resident: None = auto (based on VMEM budget), or force True/False.
    """
    batch, seq, hid = x.shape
    hid_in, pf = w1.shape
    assert hid_in == hid and w2.shape == (pf, hid)
    assert b1.shape == (pf,) and b2.shape == (hid,)

    M = batch * seq
    out_dtype = x.dtype
    isz = jnp.dtype(compute_dtype).itemsize
    osz = jnp.dtype(out_dtype).itemsize

    cap = _vmem_capacity_bytes()           # 64 MiB on v7x, 128 MiB on v5e/v6e
    budget = int(0.6 * cap)                # leave headroom for Mosaic scratch

    # ---- row tile over M: bigger tiles amortize weight streaming (roofline) --
    if tm is None:
        if M >= 4096:
            tm = 1024
        elif M >= 1024:
            tm = 512
        else:
            tm = 256
    tm = max(8, min(tm, _ceil_to(M, 8)))

    # ---- reduction tile over pf: prefer a 128-multiple that divides pf ------
    if tk is None:
        tk = 512
    tk = min(tk, pf)
    if pf % tk:
        for cand in (1024, 768, 512, 384, 256, 128):
            if cand <= tk and pf % cand == 0:
                tk = cand
                break

    # ---- shrink tiles until the streaming working set fits the VMEM budget --
    def stream_bytes(tm_, tk_):
        return (2 * tm_ * hid * isz          # x (double-buffered)
                + 2 * tm_ * hid * osz        # out (double-buffered)
                + 2 * hid * tk_ * isz        # W1 slice (double-buffered)
                + 2 * tk_ * hid * isz        # W2 slice (double-buffered)
                + tm_ * hid * 4              # f32 accumulator scratch
                + 4 * (2 * tk_ + 2 * hid))   # biases (f32)

    while stream_bytes(tm, tk) > budget and tm > 128:
        tm = max(128, tm // 2)
    while stream_bytes(tm, tk) > budget and tk > 128:
        tk = max(128, (tk // 2 // 128) * 128)

    M_pad = _ceil_to(M, tm)

    # v7x has 2 TensorCores: make sure the "parallel" M axis has >= 2 tiles
    # when the problem is big enough (costs nothing on single-TC v5e/v6e).
    if M_pad // tm == 1 and M >= 512:
        tm = _ceil_to((M + 1) // 2, 128)
        M_pad = _ceil_to(M, tm)

    pf_pad = _ceil_to(pf, tk)
    n_m = M_pad // tm
    n_k = pf_pad // tk

    # ---- decide whether both weight matrices can live in VMEM --------------
    def resident_bytes(tm_):
        return (2 * 2 * hid * pf_pad * isz   # W1 + W2 (assume double-buffered)
                + 2 * tm_ * hid * isz        # x tile
                + 2 * tm_ * hid * osz        # out tile
                + tm_ * hid * 4              # f32 accumulator
                + 4 * (2 * pf_pad + 2 * hid))

    if weight_resident is None:
        weight_resident = resident_bytes(tm) <= budget

    # ---- cast + pad operands ------------------------------------------------
    x2d = x.reshape(M, hid).astype(compute_dtype)
    if M_pad != M:
        x2d = jnp.pad(x2d, ((0, M_pad - M), (0, 0)))

    w1c = w1.astype(compute_dtype)
    w2c = w2.astype(compute_dtype)
    b1_2d = b1.reshape(1, pf).astype(jnp.float32)
    b2_2d = b2.reshape(1, hid).astype(jnp.float32)
    # NOTE: in a real model this pf padding would be hoisted to parameter-init
    # time; tk is chosen to divide pf whenever possible so it is usually a no-op.
    if pf_pad != pf:
        w1c = jnp.pad(w1c, ((0, 0), (0, pf_pad - pf)))
        b1_2d = jnp.pad(b1_2d, ((0, 0), (0, pf_pad - pf)))
        w2c = jnp.pad(w2c, ((0, pf_pad - pf), (0, 0)))

    # ---- advisory cost estimate ---------------------------------------------
    weight_passes = 1 if weight_resident else n_m
    cost = pl.CostEstimate(
        flops=4 * M_pad * hid * pf_pad,                     # two matmuls
        transcendentals=0,
        bytes_accessed=(M_pad * hid * (isz + osz)
                        + weight_passes * 2 * hid * pf_pad * isz
                        + 4 * (pf_pad + hid)),
    )

    if weight_resident:
        vmem_limit = int(min(max(resident_bytes(tm) + 8 * _MIB, 32 * _MIB), cap))
        kernel = functools.partial(ffn_resident_kernel, tk=tk, n_k=n_k)
        grid_spec = pltpu.PrefetchScalarGridSpec(
            num_scalar_prefetch=0,
            grid=(n_m,),
            in_specs=[
                pl.BlockSpec((tm, hid), lambda i: (i, 0)),        # x rows
                pl.BlockSpec((hid, pf_pad), lambda i: (0, 0)),    # W1 resident
                pl.BlockSpec((1, pf_pad), lambda i: (0, 0)),      # b1 resident
                pl.BlockSpec((pf_pad, hid), lambda i: (0, 0)),    # W2 resident
                pl.BlockSpec((1, hid), lambda i: (0, 0)),         # b2 resident
            ],
            out_specs=pl.BlockSpec((tm, hid), lambda i: (i, 0)),
            scratch_shapes=[pltpu.VMEM((tm, hid), jnp.float32)],
        )
        dim_sem = ("parallel",)
    else:
        vmem_limit = int(min(max(stream_bytes(tm, tk) + 8 * _MIB, 32 * _MIB), cap))
        kernel = ffn_stream_kernel
        grid_spec = pltpu.PrefetchScalarGridSpec(
            num_scalar_prefetch=0,
            grid=(n_m, n_k),
            in_specs=[
                pl.BlockSpec((tm, hid), lambda i, k: (i, 0)),     # x rows
                pl.BlockSpec((hid, tk), lambda i, k: (0, k)),     # W1 pf slice
                pl.BlockSpec((1, tk), lambda i, k: (0, k)),       # b1 pf slice
                pl.BlockSpec((tk, hid), lambda i, k: (k, 0)),     # W2 pf slice
                pl.BlockSpec((1, hid), lambda i, k: (0, 0)),      # b2
            ],
            out_specs=pl.BlockSpec((tm, hid), lambda i, k: (i, 0)),
            scratch_shapes=[pltpu.VMEM((tm, hid), jnp.float32)],
        )
        dim_sem = ("parallel", "arbitrary")

    out2d = pl.pallas_call(
        kernel,
        out_shape=jax.ShapeDtypeStruct((M_pad, hid), out_dtype),
        grid_spec=grid_spec,
        compiler_params=pltpu.CompilerParams(
            dimension_semantics=dim_sem,
            vmem_limit_bytes=vmem_limit,
        ),
        cost_estimate=cost,
    )(x2d, w1c, b1_2d, w2c, b2_2d)

    if M_pad != M:
        out2d = out2d[:M]
    return out2d.reshape(batch, seq, hid)


if __name__ == "__main__":
    # Small shapes consistent with the module's forward: [batch, seq, hid]
    batch, seq, hid, pf = 2, 8, 32, 64
    key = jax.random.PRNGKey(0)
    kx, k1, k2, k3, k4 = jax.random.split(key, 5)

    x = jax.random.normal(kx, (batch, seq, hid), dtype=jnp.float32)

    # Deterministic parameter init (Linear-like scaling).
    w1 = jax.random.normal(k1, (hid, pf), dtype=jnp.float32) * (1.0 / jnp.sqrt(hid))
    b1 = jax.random.normal(k2, (pf,), dtype=jnp.float32) * 0.01
    w2 = jax.random.normal(k3, (pf, hid), dtype=jnp.float32) * (1.0 / jnp.sqrt(pf))
    b2 = jax.random.normal(k4, (hid,), dtype=jnp.float32) * 0.01

    # Reference in plain JAX f32 (dropout is identity in eval mode).
    ref = jnp.maximum(x @ w1 + b1, 0.0) @ w2 + b2

    # 1) Default path: bf16 compute, weights resident in VMEM.
    out = jax.block_until_ready(positionwise_ffn(x, w1, b1, w2, b2))
    assert out.shape == (batch, seq, hid)
    assert jnp.allclose(out, ref, atol=1e-1, rtol=5e-2), "bf16 resident path mismatch"

    # 2) Streaming (grid-reduction) path, bf16.
    out_s = jax.block_until_ready(
        positionwise_ffn(x, w1, b1, w2, b2, weight_resident=False))
    assert jnp.allclose(out_s, ref, atol=1e-1, rtol=5e-2), "bf16 streaming path mismatch"

    # 3) f32 streaming path: exact-parity check at tight tolerance.
    out_f32 = jax.block_until_ready(
        positionwise_ffn(x, w1, b1, w2, b2,
                         compute_dtype=jnp.float32, weight_resident=False))
    assert jnp.allclose(out_f32, ref, atol=1e-5, rtol=1e-5), "f32 path mismatch"

    print("KERNEL_OK")
</pallas_src>

<mosaic_0001>
module attributes {stable_mosaic.version = 11 : i64} {
  func.func @ffn_resident_kernel(%arg0: i32, %arg1: memref<16x32xbf16, #tpu.memory_space<vmem>>, %arg2: memref<32x64xbf16, #tpu.memory_space<vmem>>, %arg3: memref<1x64xf32, #tpu.memory_space<vmem>>, %arg4: memref<64x32xbf16, #tpu.memory_space<vmem>>, %arg5: memref<1x32xf32, #tpu.memory_space<vmem>>, %arg6: memref<16x32xf32, #tpu.memory_space<vmem>>, %arg7: memref<16x32xf32, #tpu.memory_space<vmem>>) attributes {dimension_semantics = [#tpu.dimension_semantics<parallel>], iteration_bounds = array<i64: 1>, scalar_prefetch = 0 : i64, scratch_operands = 1 : i64, tpu.core_type = #tpu.core_type<tc>, window_params = [{transform_indices = @transform_0, window_bounds = array<i64: 16, 32>}, {pipeline_mode = #tpu.pipeline_mode<synchronous>, transform_indices = @transform_1, window_bounds = array<i64: 32, 64>}, {pipeline_mode = #tpu.pipeline_mode<synchronous>, transform_indices = @transform_2, window_bounds = array<i64: 1, 64>}, {pipeline_mode = #tpu.pipeline_mode<synchronous>, transform_indices = @transform_3, window_bounds = array<i64: 64, 32>}, {pipeline_mode = #tpu.pipeline_mode<synchronous>, transform_indices = @transform_4, window_bounds = array<i64: 1, 32>}, {transform_indices = @transform_5, window_bounds = array<i64: 16, 32>}]} {
    %cst = arith.constant 0.000000e+00 : f32
    %0 = vector.broadcast %cst : f32 to vector<16x32xf32>
    %c0 = arith.constant 0 : index
    %c0_0 = arith.constant 0 : index
    %1 = vector.load %arg7[%c0, %c0_0] : memref<16x32xf32, #tpu.memory_space<vmem>>, vector<16x32xf32>
    tpu.vector_store %arg7[%c0, %c0_0], %0 {strides = array<i32>} : memref<16x32xf32, #tpu.memory_space<vmem>>, vector<16x32xf32>,
    %c0_1 = arith.constant 0 : index
    %c0_2 = arith.constant 0 : index
    %2 = vector.load %arg1[%c0_1, %c0_2] : memref<16x32xbf16, #tpu.memory_space<vmem>>, vector<16x32xbf16>
    %c0_3 = arith.constant 0 : index
    %c0_4 = arith.constant 0 : index
    %3 = vector.load %arg2[%c0_3, %c0_4] : memref<32x64xbf16, #tpu.memory_space<vmem>>, vector<32x64xbf16>
    %c0_5 = arith.constant 0 : index
    %c0_6 = arith.constant 0 : index
    %4 = vector.load %arg3[%c0_5, %c0_6] : memref<1x64xf32, #tpu.memory_space<vmem>>, vector<1x64xf32>
    %c0_7 = arith.constant 0 : index
    %c0_8 = arith.constant 0 : index
    %5 = vector.load %arg4[%c0_7, %c0_8] : memref<64x32xbf16, #tpu.memory_space<vmem>>, vector<64x32xbf16>
    %cst_9 = arith.constant dense<0.000000e+00> : vector<16x64xf32>
    %6 = tpu.matmul %2, %3, %cst_9 {dimension_numbers = #tpu.dot_dimension_numbers<[1], [0], [0], [1], [0, 0, 1, 1], [], []>} : vector<16x32xbf16>, vector<32x64xbf16>, vector<16x64xf32> -> vector<16x64xf32>
    %7 = vector.broadcast %4 : vector<1x64xf32> to vector<16x64xf32>
    %8 = arith.addf %6, %7 : vector<16x64xf32>
    %cst_10 = arith.constant 0.000000e+00 : f32
    %9 = vector.broadcast %cst_10 : f32 to vector<16x64xf32>
    %10 = arith.maximumf %8, %9 : vector<16x64xf32>
    %c0_11 = arith.constant 0 : index
    %c0_12 = arith.constant 0 : index
    %11 = vector.load %arg7[%c0_11, %c0_12] : memref<16x32xf32, #tpu.memory_space<vmem>>, vector<16x32xf32>
    %12 = arith.truncf %10 : vector<16x64xf32> to vector<16x64xbf16>
    %cst_13 = arith.constant dense<0.000000e+00> : vector<16x32xf32>
    %13 = tpu.matmul %12, %5, %cst_13 {dimension_numbers = #tpu.dot_dimension_numbers<[1], [0], [0], [1], [0, 0, 1, 1], [], []>} : vector<16x64xbf16>, vector<64x32xbf16>, vector<16x32xf32> -> vector<16x32xf32>
    %14 = arith.addf %11, %13 : vector<16x32xf32>
    %c0_14 = arith.constant 0 : index
    %c0_15 = arith.constant 0 : index
    %15 = vector.load %arg7[%c0_14, %c0_15] : memref<16x32xf32, #tpu.memory_space<vmem>>, vector<16x32xf32>
    tpu.vector_store %arg7[%c0_14, %c0_15], %14 {strides = array<i32>} : memref<16x32xf32, #tpu.memory_space<vmem>>, vector<16x32xf32>,
    %c0_16 = arith.constant 0 : index
    %c0_17 = arith.constant 0 : index
    %16 = vector.load %arg7[%c0_16, %c0_17] : memref<16x32xf32, #tpu.memory_space<vmem>>, vector<16x32xf32>
    %c0_18 = arith.constant 0 : index
    %c0_19 = arith.constant 0 : index
    %17 = vector.load %arg5[%c0_18, %c0_19] : memref<1x32xf32, #tpu.memory_space<vmem>>, vector<1x32xf32>
    %18 = vector.broadcast %17 : vector<1x32xf32> to vector<16x32xf32>
    %19 = arith.addf %16, %18 : vector<16x32xf32>
    %c0_20 = arith.constant 0 : index
    %c0_21 = arith.constant 0 : index
    %20 = vector.load %arg6[%c0_20, %c0_21] : memref<16x32xf32, #tpu.memory_space<vmem>>, vector<16x32xf32>
    tpu.vector_store %arg6[%c0_20, %c0_21], %19 {strides = array<i32>} : memref<16x32xf32, #tpu.memory_space<vmem>>, vector<16x32xf32>,
    return
  }
  func.func @transform_0(%arg0: i32) -> (i32, i32) {
    %c0_i32 = arith.constant 0 : i32
    %c0_i32_0 = arith.constant 0 : i32
    return %arg0, %c0_i32 : i32, i32
  }
  func.func @transform_1(%arg0: i32) -> (i32, i32) {
    %c0_i32 = arith.constant 0 : i32
    %c0_i32_0 = arith.constant 0 : i32
    %c0_i32_1 = arith.constant 0 : i32
    return %c0_i32, %c0_i32_0 : i32, i32
  }
  func.func @transform_2(%arg0: i32) -> (i32, i32) {
    %c0_i32 = arith.constant 0 : i32
    %c0_i32_0 = arith.constant 0 : i32
    %c0_i32_1 = arith.constant 0 : i32
    return %c0_i32, %c0_i32_0 : i32, i32
  }
  func.func @transform_3(%arg0: i32) -> (i32, i32) {
    %c0_i32 = arith.constant 0 : i32
    %c0_i32_0 = arith.constant 0 : i32
    %c0_i32_1 = arith.constant 0 : i32
    return %c0_i32, %c0_i32_0 : i32, i32
  }
  func.func @transform_4(%arg0: i32) -> (i32, i32) {
    %c0_i32 = arith.constant 0 : i32
    %c0_i32_0 = arith.constant 0 : i32
    %c0_i32_1 = arith.constant 0 : i32
    return %c0_i32, %c0_i32_0 : i32, i32
  }
  func.func @transform_5(%arg0: i32) -> (i32, i32) {
    %c0_i32 = arith.constant 0 : i32
    %c0_i32_0 = arith.constant 0 : i32
    return %arg0, %c0_i32 : i32, i32
  }
}

</mosaic_0001>

<llo_original>
// kernel: tpu_custom_call.1
$region0: #{tpu_custom_call.1}
  #allocation0 [shape = 'u32[]', space=smem, size = 0x4, offset = 0x4, fixed_abs, tag = 'smem constant byte address 0x4 - core index']
  #allocation1 [shape = 'u32[144,128]{1,0:T(1,128)}', space=vmem, size = 0x12000, scoped, tag = 'internal scratch']
  #allocation2 [shape = 'f32[16,32]{1,0:T(8,128)}', space=vmem, size = 0x2000, scoped, tag = 'scratch operand']
  %s0 = inlined_call_operand.vmem [shape: bf16[16,32], index: 0, kind: input, shape index: {}]
  %s1 = inlined_call_operand.vmem [shape: bf16[32,64], index: 1, kind: input, shape index: {}]
  %s2 = inlined_call_operand.vmem [shape: f32[1,64], index: 2, kind: input, shape index: {}]
  %s3 = inlined_call_operand.vmem [shape: bf16[64,32], index: 3, kind: input, shape index: {}]
  %s4 = inlined_call_operand.vmem [shape: f32[1,32], index: 4, kind: input, shape index: {}]
  %s5 = inlined_call_operand.hbm [shape: f32[16,32], index: 5, kind: output, shape index: {}]
  %s6 = sld [smem:[#allocation0]]
  $region30: #{tpu_custom_call.1} parent=0
    _
  %s8 = ssub.s32 1, %s6
  %s9 = scalar_select 0, %s8, %s6
  $region1: #{tpu_custom_call.1} parent=0
    #allocation3 [shape = 'u8[8192]{0}', space=vmem, size = 0x2000, scoped, tag = 'output window, operand 0, single buffered']
    #allocation4 [shape = 's32[1]{0}', space=sflag, size = 0x4, scoped, tag = 'scoped memory for tpu_custom_call.1']
    %10 = vsyncpa [#allocation4], 0
    // Predicated region
    $region2: #{tpu_custom_call.1} parent=1 // pred_check
      _
    $region3: #{tpu_custom_call.1} parent=1 // pred_check_branch
      %12 = sbr.rel (0) target = $region5
    $region4: #{tpu_custom_call.1} parent=1 // pred_region
      _
    $region5: #{tpu_custom_call.1} parent=1 // pred_fallthru
      _
    // Predicated region
    $region6: #{tpu_custom_call.1} parent=1 // pred_check
      _
    $region7: #{tpu_custom_call.1} parent=1 // pred_check_branch
      %14 = sbr.rel (0) target = $region9
    $region8: #{tpu_custom_call.1} parent=1 // pred_region
      _
    $region9: #{tpu_custom_call.1} parent=1 // pred_fallthru
      _
    // Predicated region
    $region10: #{tpu_custom_call.1} parent=1 // pred_check
      _
    $region11: #{tpu_custom_call.1} parent=1 // pred_check_branch
      %16 = sbr.rel (0) target = $region13
    $region12: #{tpu_custom_call.1} parent=1 // pred_region
      _
    $region13: #{tpu_custom_call.1} parent=1 // pred_fallthru
      _
    // Predicated region
    $region14: #{tpu_custom_call.1} parent=1 // pred_check
      _
    $region15: #{tpu_custom_call.1} parent=1 // pred_check_branch
      %18 = sbr.rel (0) target = $region17
    $region16: #{tpu_custom_call.1} parent=1 // pred_region
      _
    $region17: #{tpu_custom_call.1} parent=1 // pred_fallthru
      _
    // Predicated region
    $region18: #{tpu_custom_call.1} parent=1 // pred_check
      _
    $region19: #{tpu_custom_call.1} parent=1 // pred_check_branch
      %20 = sbr.rel (0) target = $region21
    $region20: #{tpu_custom_call.1} parent=1 // pred_region
      _
    $region21: #{tpu_custom_call.1} parent=1 // pred_fallthru
      _
    %vm22 = vcmask 261120
    %23 = vst.msk [vmem:[#allocation2] sm:$0xff] %vm22, 0.0
    %24 = vst.msk [vmem:[#allocation2 + $0x8] sm:$0xff] %vm22, 0.0
    %v25 = vld [vmem:[%s0] sm:$0xf]
    %v26 = vld [vmem:[%s0 + $0x4] sm:$0xf]
    %v27 = vld [vmem:[%s1] sm:$0xf]
    %v28 = vld [vmem:[%s1 + $0x4] sm:$0xf]
    %v29 = vld [vmem:[%s1 + $0x8] sm:$0xf]
    %v30 = vld [vmem:[%s1 + $0xc] sm:$0xf]
    %v31 = vld [vmem:[%s2] sm:$0x1]
    %v32 = vld [vmem:[%s3] sm:$0xf]
    %v33 = vld [vmem:[%s3 + $0x4] sm:$0xf]
    %v34 = vld [vmem:[%s3 + $0x8] sm:$0xf]
    %v35 = vld [vmem:[%s3 + $0xc] sm:$0xf]
    %v36 = vld [vmem:[%s3 + $0x10] sm:$0xf]
    %v37 = vld [vmem:[%s3 + $0x14] sm:$0xf]
    %v38 = vld [vmem:[%s3 + $0x18] sm:$0xf]
    %v39 = vld [vmem:[%s3 + $0x1c] sm:$0xf]
    %v41 = vlaneseq
    %v42 = vshrl.u32 %v41, 7
    %v43 = vsub.s32 0, %v42
    %v44 = vrot.slane %v31, %v43
    %v48 = vunpack.c.l.b16 %v25
    %v49 = vunpack.c.l.b16 %v26
    %v50 = vpack.c.b16 %v49, %v48
    %v55 = vunpack.c.l.b16 %v27
    %v56 = vunpack.c.l.b16 %v28
    %v57 = vunpack.c.l.b16 %v29
    %v58 = vunpack.c.l.b16 %v30
    %v59 = vpack.c.b16 %v56, %v55
    %v60 = vpack.c.b16 %v58, %v57
    %v64 = vsel %vm22, %v50, 0
    %66 = vmatprep.subr.bf16.mxu0 0
    %67 = vmatpush1.bf16.msra.mxu0 %v59
    %68 = vmatprep.subr.bf16.mxu0 0
    %69 = vmatpush1.bf16.msra.mxu0 %v60
    %70 = vmatprep.subr.bf16.mxu0 0
    %71 = vmatpush1.bf16.msra.mxu0 0
    %72 = vmatprep.subr.bf16.mxu0 0
    %73 = vmatpush1.bf16.msra.mxu0 0
    %74 = vmatprep.subr.bf16.mxu0 0
    %75 = vmatpush1.bf16.msra.mxu0 0
    %76 = vmatprep.subr.bf16.mxu0 0
    %77 = vmatpush1.bf16.msra.mxu0 0
    %78 = vmatprep.subr.bf16.mxu0 0
    %79 = vmatpush1.bf16.msra.mxu0 0
    %80 = vmatprep.subr.bf16.mxu0 0
    %81 = vmatpush1.bf16.msra.mxu0 0
    %82 = vmatprep.subr.bf16.mxu0 0
    %83 = vmatpush1.bf16.msra.mxu0 0
    %84 = vmatprep.subr.bf16.mxu0 0
    %85 = vmatpush1.bf16.msra.mxu0 0
    %86 = vmatprep.subr.bf16.mxu0 0
    %87 = vmatpush1.bf16.msra.mxu0 0
    %88 = vmatprep.subr.bf16.mxu0 0
    %89 = vmatpush1.bf16.msra.mxu0 0
    %90 = vmatprep.subr.bf16.mxu0 0
    %91 = vmatpush1.bf16.msra.mxu0 0
    %92 = vmatprep.subr.bf16.mxu0 0
    %93 = vmatpush1.bf16.msra.mxu0 0
    %94 = vmatprep.subr.bf16.mxu0 0
    %95 = vmatpush1.bf16.msra.mxu0 0
    %96 = vmatprep.subr.bf16.mxu0 0
    %97 = vmatpush1.bf16.msra.mxu0 0
    %98 = vmatprep.mubr.bf16.mxu0 0
    %99 = vmatmul.mubr.bf16.gmra.mrb[0].mxu0 %v64
    %v100 = vpop.f32.mrb[0].mxu0
    %v101 = vadd.f32 %v44, %v100
    %v102 = vpop.f32.mrb[0].mxu0
    %v103 = vpop.f32.mrb[0].mxu0
    %v104 = vadd.f32 %v44, %v103
    %v105 = vpop.f32.mrb[0].mxu0
    %106 = vdwg.mxu0
    %v107 = vmax.f32 %v101, 0.0
    %v108 = vmax.f32 %v104, 0.0
    %v109 = vld [vmem:[#allocation2] sm:$0xff]
    %v110 = vld [vmem:[#allocation2 + $0x8] sm:$0xff]
    %v111 = vpack.c.bf16 %v108, %v107
    %v120 = vunpack.c.l.b16 %v32
    %v121 = vunpack.c.l.b16 %v33
    %v122 = vunpack.c.l.b16 %v34
    %v123 = vunpack.c.l.b16 %v35
    %v124 = vunpack.c.l.b16 %v36
    %v125 = vunpack.c.l.b16 %v37
    %v126 = vunpack.c.l.b16 %v38
    %v127 = vunpack.c.l.b16 %v39
    %v128 = vpack.c.b16 %v121, %v120
    %v129 = vpack.c.b16 %v123, %v122
    %v130 = vpack.c.b16 %v125, %v124
    %v131 = vpack.c.b16 %v127, %v126
    %vm136 = vcmask 523264
    %v138 = vsel %vm136, %v111, 0
    %140 = vmatprep.subr.bf16.mxu0 0
    %141 = vmatpush1.bf16.msra.mxu0 %v128
    %142 = vmatprep.subr.bf16.mxu0 0
    %143 = vmatpush1.bf16.msra.mxu0 %v129
    %144 = vmatprep.subr.bf16.mxu0 0
    %145 = vmatpush1.bf16.msra.mxu0 %v130
    %146 = vmatprep.subr.bf16.mxu0 0
    %147 = vmatpush1.bf16.msra.mxu0 %v131
    %148 = vmatprep.subr.bf16.mxu0 0
    %149 = vmatpush1.bf16.msra.mxu0 0
    %150 = vmatprep.subr.bf16.mxu0 0
    %151 = vmatpush1.bf16.msra.mxu0 0
    %152 = vmatprep.subr.bf16.mxu0 0
    %153 = vmatpush1.bf16.msra.mxu0 0
    %154 = vmatprep.subr.bf16.mxu0 0
    %155 = vmatpush1.bf16.msra.mxu0 0
    %156 = vmatprep.subr.bf16.mxu0 0
    %157 = vmatpush1.bf16.msra.mxu0 0
    %158 = vmatprep.subr.bf16.mxu0 0
    %159 = vmatpush1.bf16.msra.mxu0 0
    %160 = vmatprep.subr.bf16.mxu0 0
    %161 = vmatpush1.bf16.msra.mxu0 0
    %162 = vmatprep.subr.bf16.mxu0 0
    %163 = vmatpush1.bf16.msra.mxu0 0
    %164 = vmatprep.subr.bf16.mxu0 0
    %165 = vmatpush1.bf16.msra.mxu0 0
    %166 = vmatprep.subr.bf16.mxu0 0
    %167 = vmatpush1.bf16.msra.mxu0 0
    %168 = vmatprep.subr.bf16.mxu0 0
    %169 = vmatpush1.bf16.msra.mxu0 0
    %170 = vmatprep.subr.bf16.mxu0 0
    %171 = vmatpush1.bf16.msra.mxu0 0
    %172 = vmatprep.mubr.bf16.mxu0 0
    %173 = vmatmul.mubr.bf16.gmra.mrb[0].mxu0 %v138
    %v174 = vpop.f32.mrb[0].mxu0
    %v175 = vadd.f32 0.0, %v174
    %v176 = vpop.f32.mrb[0].mxu0
    %v177 = vpop.f32.mrb[0].mxu0
    %v178 = vadd.f32 0.0, %v177
    %v179 = vpop.f32.mrb[0].mxu0
    %180 = vdwg.mxu0
    %v181 = vadd.f32 %v109, %v175
    %v182 = vadd.f32 %v110, %v178
    %183 = vst.msk [vmem:[#allocation2] sm:$0xff] %vm22, %v181
    %184 = vst.msk [vmem:[#allocation2 + $0x8] sm:$0xff] %vm22, %v182
    %v185 = vld [vmem:[#allocation2] sm:$0xff]
    %v186 = vld [vmem:[#allocation2 + $0x8] sm:$0xff]
    %v187 = vld [vmem:[%s4] sm:$0x1]
    %v189 = vlaneseq
    %v190 = vshrl.u32 %v189, 7
    %v191 = vsub.s32 0, %v190
    %v192 = vrot.slane %v187, %v191
    %v194 = vadd.f32 %v185, %v192
    %v195 = vadd.f32 %v186, %v192
    %196 = vst.msk [vmem:[#allocation3] sm:$0xff] %vm22, %v194
    %197 = vst.msk [vmem:[#allocation3 + $0x8] sm:$0xff] %vm22, %v195
    // Predicated region
    $region22: #{tpu_custom_call.1} parent=1 // pred_check
      _
    $region23: #{tpu_custom_call.1} parent=1 // pred_check_branch
      %199 = sbr.rel (0) target = $region25
    $region24: #{tpu_custom_call.1} parent=1 // pred_region
      %s201 = ssub.s32 256, 256
      %202 = vsyncadd [#allocation4], %s201
      %s203 = sshll.u32 [#allocation3], 4
      %s204 = int_to_ptr.vmem [resolvable:$true] %s203
      %209 = dma.vmem_to_hbm [thread:$0]  %s204, 256, %s5, [#allocation4], 128, 128, 8
    $region25: #{tpu_custom_call.1} parent=1 // pred_fallthru
      _
    // Predicated region
    $region26: #{tpu_custom_call.1} parent=1 // pred_check
      _
    $region27: #{tpu_custom_call.1} parent=1 // pred_check_branch
      %211 = sbr.rel (0) target = $region29
    $region28: #{tpu_custom_call.1} parent=1 // pred_region
      %212 = dma.done [#allocation4], 256
    $region29: #{tpu_custom_call.1} parent=1 // pred_fallthru
      _
    %213 = vsyncpa [#allocation4], 1

</llo_original>
